<compile_context>
chip_gen: v5e
topology: v5e:2x2
jax: 0.10.0
libtpu: 0.0.40
codegen_flags: <defaults>
</compile_context>

<pallas_src>
import numpy as np
import jax
import jax.numpy as jnp
from jax.experimental import pallas as pl
from jax.experimental.pallas import tpu as pltpu

try:  # prefer scipy's C solver when present; fall back to a pure-Python JV solver.
    from scipy.optimize import linear_sum_assignment as _scipy_lsa
except Exception:  # pragma: no cover
    _scipy_lsa = None

_EPSILON = 1e-08
_NUM_SPLITS = 2  # leading "parallel" grid axis: both TCs on v7x, harmless on v5e/v6e


def _round_up(x, m):
    return ((x + m - 1) // m) * m


def _vmem_capacity_bytes():
    """Per-core VMEM capacity (128 MiB v5e/v6e, 64 MiB v7x); conservative fallback if unknown."""
    try:
        return int(pltpu.get_tpu_info().vmem_capacity_bytes)
    except Exception:
        return 64 * 1024 * 1024


# --------------------------------------------------------------------------------------
# Pallas kernel: masked, class-weighted cross-entropy, reduced to a per-split sum
# --------------------------------------------------------------------------------------
def _ce_kernel(logits_ref, labels_ref, weight_ref, loss_sum_ref, acc_ref):
    i = pl.program_id(1)  # inner ("arbitrary") reduction axis

    @pl.when(i == 0)
    def _init():
        acc_ref[...] = jnp.zeros_like(acc_ref)

    logits = logits_ref[...].astype(jnp.float32)          # (TN, C)
    labels = labels_ref[...]                              # (TN, 1) int32; -1 == ignore (masked / pad)
    w = weight_ref[...]                                   # (1, C)  f32

    # Row-wise stable log-sum-exp.
    row_max = jnp.max(logits, axis=-1, keepdims=True)
    lse = jnp.log(jnp.sum(jnp.exp(logits - row_max), axis=-1, keepdims=True)) + row_max
    # TODO(synk): for very large C, add class-dim tiling with an online (flash-style) LSE so the
    # (rows, C) block stays within v7x's 64 MiB VMEM; the full-C block is fine for moderate C.

    # Fused gather: w[y] * (lse - logit[y]) == sum_c [c == y] * w_c * (lse - logit_c).
    # The class iota is a single (1, C) row; masked-out rows carry label -1 and match no class,
    # so they contribute exactly 0 without any per-tile mask multiply.
    col = jax.lax.broadcasted_iota(jnp.int32, (1, logits.shape[1]), 1)   # (1, C)
    contrib = jnp.where(col == labels, w * (lse - logits), 0.0)          # (TN, C)

    # Lane-dense accumulation: collapse sublane groups with plain vreg adds; keep an (8, C)
    # resident partial.  The cross-lane collapse to a scalar is deferred to the last step.
    tn, c = contrib.shape
    acc_ref[...] += jnp.sum(contrib.reshape(tn // 8, 8, c), axis=0)      # (8, C)

    @pl.when(i == pl.num_programs(1) - 1)
    def _finalize():
        part = jnp.sum(acc_ref[...], axis=0, keepdims=True)              # (1, C)
        loss_sum_ref[...] = jnp.sum(part, axis=1, keepdims=True)[None]   # (1, 1, 1)


@jax.jit
def _masked_weighted_ce_sums(logits, labels, mask, weight):
    """logits [N,C] f32, labels [N,1] i32, mask [N,1] f32, weight [1,C] f32 -> (sum_loss, sum_mask)."""
    n, c = logits.shape

    # Token count stays on the XLA side (fuses with the surrounding reshapes/casts).
    mask_sum = jnp.sum(mask)

    # Fold the mask into the labels (-1 == ignore) and range-guard the ids, so the kernel needs
    # neither a mask stream nor a bounds check.  (PyTorch would raise on an out-of-range gather
    # id; here it is clipped — matched gold ids are always in range in practice.)
    labels = jnp.where(mask > 0, jnp.clip(labels, 0, c - 1), jnp.int32(-1))

    # ---- byte-based tile sizing (per generation) ----
    vmem_cap = _vmem_capacity_bytes()                       # 128 MiB v5e/v6e, 64 MiB v7x
    pipeline_budget = min(32 * 1024 * 1024, vmem_cap // 4)  # double-buffered input working set
    # logits: 4C B/row x2 buffers; labels: (TN,1) pads to 128 lanes -> 512 B/row x2 buffers.
    per_row_bytes = 2 * 4 * c + 2 * 512
    rows_by_vmem = max(8, (pipeline_budget // per_row_bytes) // 8 * 8)

    # Split rows evenly over the minimal number of blocks that respects the VMEM bound, so the
    # zero/-1 padded tail is at most a few sublane groups.
    rows_per_split = pl.cdiv(n, _NUM_SPLITS)
    blocks_per_split = max(1, pl.cdiv(rows_per_split, rows_by_vmem))
    tile_n = _round_up(pl.cdiv(rows_per_split, blocks_per_split), 8)
    n_pad = _NUM_SPLITS * blocks_per_split * tile_n
    if n_pad != n:
        pad = n_pad - n
        # Padded rows: logits 0 (finite lse), label -1 -> contribute exactly 0.
        logits = jnp.pad(logits, ((0, pad), (0, 0)))
        labels = jnp.pad(labels, ((0, pad), (0, 0)), constant_values=-1)

    def row_map(p, i, bps=blocks_per_split):
        return (p * bps + i, 0)

    loss_parts = pl.pallas_call(
        _ce_kernel,
        out_shape=jax.ShapeDtypeStruct((_NUM_SPLITS, 1, 1), jnp.float32),
        grid_spec=pltpu.PrefetchScalarGridSpec(
            num_scalar_prefetch=0,
            grid=(_NUM_SPLITS, blocks_per_split),
            in_specs=[
                pl.BlockSpec((tile_n, c), row_map),
                pl.BlockSpec((tile_n, 1), row_map),
                pl.BlockSpec((1, c), lambda p, i: (0, 0)),
            ],
            out_specs=pl.BlockSpec((1, 1, 1), lambda p, i: (p, 0, 0)),
            scratch_shapes=[pltpu.VMEM((8, c), jnp.float32)],
        ),
        compiler_params=pltpu.CompilerParams(
            # "parallel" outer axis lets v7x's two TensorCores split the rows; no-op on v5e/v6e.
            # TODO(synk): if a trace shows one TC idle on v7x, switch this axis to CORE_PARALLEL.
            dimension_semantics=("parallel", "arbitrary"),
            vmem_limit_bytes=min(64 * 1024 * 1024, max(32 * 1024 * 1024, (vmem_cap * 3) // 4)),
        ),
    )(logits, labels, weight)
    return jnp.sum(loss_parts), mask_sum


# --------------------------------------------------------------------------------------
# Device-side construction of the per-batch matching cost matrices (small transfer to host)
# --------------------------------------------------------------------------------------
@jax.jit
def _matching_costs(outputs, gold_label_ids, mask, weight):
    """cost[b, s, t] = -log_softmax over valid gold columns of outputs[b, s, gold[b, :]] * w[gold[b, t]].

    The softmax normalizes over the masked (valid) gold columns only, matching the original's
    per-batch log_softmax over the gathered columns.  Invalid columns hold garbage and are
    sliced off on the host before the assignment solve.
    """
    b, s, c = outputs.shape
    gold = jnp.clip(gold_label_ids.astype(jnp.int32), 0, c - 1)
    idx = jnp.broadcast_to(gold[:, None, :], (b, s, s))
    gathered = jnp.take_along_axis(outputs, idx, axis=2)                # (B, S, S)
    col_valid = mask[:, None, :].astype(bool)                           # (B, 1, S)
    masked = jnp.where(col_valid, gathered, jnp.float32(-1e30))
    lse = jax.nn.logsumexp(masked, axis=2, keepdims=True)               # (B, S, 1)
    w_g = weight[gold]                                                  # (B, S)
    return -(gathered - lse) * w_g[:, None, :]                          # (B, S, S)


# --------------------------------------------------------------------------------------
# Host-side Hungarian assignment fallback (used only if scipy is unavailable)
# --------------------------------------------------------------------------------------
def _linear_sum_assignment(cost):
    """Minimal Jonker-Volgenant style solver for rectangular cost matrices."""
    cost = np.asarray(cost, dtype=np.float64)
    transposed = False
    if cost.shape[0] > cost.shape[1]:
        cost = cost.T
        transposed = True
    n, m = cost.shape  # n <= m
    INF = float("inf")
    u = np.zeros(n + 1)
    v = np.zeros(m + 1)
    p = np.zeros(m + 1, dtype=np.int64)     # p[j] = row (1-indexed) matched to column j
    way = np.zeros(m + 1, dtype=np.int64)
    for i in range(1, n + 1):
        p[0] = i
        j0 = 0
        minv = np.full(m + 1, INF)
        used = np.zeros(m + 1, dtype=bool)
        while True:
            used[j0] = True
            i0 = p[j0]
            delta = INF
            j1 = -1
            for j in range(1, m + 1):
                if not used[j]:
                    cur = cost[i0 - 1, j - 1] - u[i0] - v[j]
                    if cur < minv[j]:
                        minv[j] = cur
                        way[j] = j0
                    if minv[j] < delta:
                        delta = minv[j]
                        j1 = j
            for j in range(m + 1):
                if used[j]:
                    u[p[j]] += delta
                    v[j] -= delta
                else:
                    minv[j] -= delta
            j0 = j1
            if p[j0] == 0:
                break
        while True:
            j1 = way[j0]
            p[j0] = p[j1]
            j0 = j1
            if j0 == 0:
                break
    rows, cols = [], []
    for j in range(1, m + 1):
        if p[j] != 0:
            rows.append(p[j] - 1)
            cols.append(j - 1)
    rows = np.asarray(rows, dtype=np.int64)
    cols = np.asarray(cols, dtype=np.int64)
    if transposed:
        rows, cols = cols, rows
    order = np.argsort(rows)
    return rows[order], cols[order]


# --------------------------------------------------------------------------------------
# Full forward pass
# --------------------------------------------------------------------------------------
def bipartite_matching_loss(outputs, gold_label_ids, mask, weight=None, reduce=True):
    """JAX/Pallas port of BipartiteMatchingLoss.forward (reduce=True path)."""
    outputs = jnp.asarray(outputs, jnp.float32)
    gold_label_ids = jnp.asarray(gold_label_ids, jnp.int32)
    mask = jnp.asarray(mask)
    b, s, c = outputs.shape
    n = b * s
    if weight is None:
        weight = jnp.ones((c,), jnp.float32)
    weight = jnp.asarray(weight, jnp.float32)

    # NOTE: the original also computes `check_loss` and discards it; that dead work is dropped
    # here (no effect on the returned loss).

    # ---- Hungarian matching per batch element ----
    # Cost matrices are built on device; only the small (B, S, S) tensor is copied to host.
    # TODO(synk): linear_sum_assignment has no Pallas/TPU equivalent; the assignment runs on host.
    costs = _matching_costs(outputs, gold_label_ids, mask, weight)
    cost_np = np.asarray(costs)
    gold_np = np.asarray(gold_label_ids)
    lens_np = np.asarray(mask).astype(bool).sum(axis=1)

    match_gold = np.zeros_like(gold_np)
    for idx in range(b):
        gold_len = int(lens_np[idx])
        if gold_len == 0:
            continue
        cm = cost_np[idx, :, :gold_len]                 # (S, L)
        cm = np.where(np.isinf(cm), 1e8, cm)
        if _scipy_lsa is not None:
            _row_ind, col_ind = _scipy_lsa(cm)
        else:
            _row_ind, col_ind = _linear_sum_assignment(cm)
        match_gold[idx, :gold_len] = gold_np[idx][col_ind]

    match_gold = jnp.asarray(match_gold, jnp.int32).reshape(n, 1)

    # ---- Final matched cross-entropy loss (Pallas kernel) ----
    logits_flat = outputs.reshape(n, c)
    mask_flat = mask.reshape(n, 1).astype(jnp.float32)
    weight_2d = weight.reshape(1, c)

    loss_sum, mask_sum = _masked_weighted_ce_sums(logits_flat, match_gold, mask_flat, weight_2d)
    if reduce:
        return loss_sum / (mask_sum + _EPSILON)
    # TODO(synk): reduce=False (per-token vector) path is not wired through the reduction kernel.
    raise NotImplementedError("reduce=False path not implemented")


if __name__ == "__main__":
    key = jax.random.PRNGKey(0)
    k_out, k_lab = jax.random.split(key)

    B, S, C = 2, 8, 32
    outputs = jax.random.normal(k_out, (B, S, C), dtype=jnp.float32)
    gold_label_ids = jax.random.randint(k_lab, (B, S), 0, C, dtype=jnp.int32)

    gold_lens = [5, 7]
    mask_np = np.zeros((B, S), dtype=bool)
    for i, L in enumerate(gold_lens):
        mask_np[i, :L] = True
    mask = jnp.asarray(mask_np)

    # Direct kernel check against a pure-jnp reference (masked, class-weighted CE sums).
    weight = jnp.ones((C,), jnp.float32)
    logits_flat = outputs.reshape(B * S, C)
    labels_flat = gold_label_ids.reshape(B * S, 1)
    mask_flat = mask.reshape(B * S, 1).astype(jnp.float32)
    k_loss, k_cnt = _masked_weighted_ce_sums(logits_flat, labels_flat, mask_flat, weight.reshape(1, C))
    logp = jax.nn.log_softmax(logits_flat, axis=-1)
    nll = -jnp.take_along_axis(logp, labels_flat, axis=1)
    ref_loss = jnp.sum(nll * weight[labels_flat[:, 0]][:, None] * mask_flat)
    ref_cnt = jnp.sum(mask_flat)
    np.testing.assert_allclose(np.asarray(k_loss), np.asarray(ref_loss), rtol=1e-4, atol=1e-5)
    np.testing.assert_allclose(np.asarray(k_cnt), np.asarray(ref_cnt), rtol=1e-6, atol=1e-6)

    # Full forward pass.
    loss = bipartite_matching_loss(outputs, gold_label_ids, mask)
    loss = jax.block_until_ready(loss)
    assert jnp.isfinite(loss)
    print("KERNEL_OK")
</pallas_src>

<mosaic_0001>
module attributes {stable_mosaic.version = 11 : i64} {
  func.func @_ce_kernel(%arg0: i32, %arg1: i32, %arg2: memref<8x32xf32, #tpu.memory_space<vmem>>, %arg3: memref<8x1xi32, #tpu.memory_space<vmem>>, %arg4: memref<1x32xf32, #tpu.memory_space<vmem>>, %arg5: memref<1x1x1xf32, #tpu.memory_space<vmem>>, %arg6: memref<8x32xf32, #tpu.memory_space<vmem>>) attributes {dimension_semantics = [#tpu.dimension_semantics<parallel>, #tpu.dimension_semantics<arbitrary>], iteration_bounds = array<i64: 2, 1>, scalar_prefetch = 0 : i64, scratch_operands = 1 : i64, tpu.core_type = #tpu.core_type<tc>, window_params = [{transform_indices = @transform_0, window_bounds = array<i64: 8, 32>}, {transform_indices = @transform_1, window_bounds = array<i64: 8, 1>}, {pipeline_mode = #tpu.pipeline_mode<synchronous>, transform_indices = @transform_2, window_bounds = array<i64: 1, 32>}, {transform_indices = @transform_3, window_bounds = array<i64: 1, 1, 1>}]} {
    %c0_i32 = arith.constant 0 : i32
    %0 = arith.cmpi eq, %arg1, %c0_i32 : i32
    %1 = arith.extui %0 : i1 to i32
    %c0_i32_0 = arith.constant 0 : i32
    %2 = arith.cmpi ne, %1, %c0_i32_0 : i32
    scf.if %2 {
      %cst_15 = arith.constant 0.000000e+00 : f32
      %33 = vector.broadcast %cst_15 : f32 to vector<8x32xf32>
      %c0_16 = arith.constant 0 : index
      %c0_17 = arith.constant 0 : index
      %34 = vector.load %arg6[%c0_16, %c0_17] : memref<8x32xf32, #tpu.memory_space<vmem>>, vector<8x32xf32>
      tpu.vector_store %arg6[%c0_16, %c0_17], %33 {strides = array<i32>} : memref<8x32xf32, #tpu.memory_space<vmem>>, vector<8x32xf32>,
    } else {
    }
    %c0 = arith.constant 0 : index
    %c0_1 = arith.constant 0 : index
    %3 = vector.load %arg2[%c0, %c0_1] : memref<8x32xf32, #tpu.memory_space<vmem>>, vector<8x32xf32>
    %c0_2 = arith.constant 0 : index
    %c0_3 = arith.constant 0 : index
    %4 = vector.load %arg3[%c0_2, %c0_3] : memref<8x1xi32, #tpu.memory_space<vmem>>, vector<8x1xi32>
    %c0_4 = arith.constant 0 : index
    %c0_5 = arith.constant 0 : index
    %5 = vector.load %arg4[%c0_4, %c0_5] : memref<1x32xf32, #tpu.memory_space<vmem>>, vector<1x32xf32>
    %cst = arith.constant dense<0xFF800000> : vector<8xf32>
    %6 = vector.multi_reduction <maximumf>, %3, %cst [1] : vector<8x32xf32> to vector<8xf32>
    %7 = vector.shape_cast %6 : vector<8xf32> to vector<8x1xf32>
    %8 = vector.broadcast %7 : vector<8x1xf32> to vector<8x32xf32>
    %9 = arith.subf %3, %8 : vector<8x32xf32>
    %10 = math.exp %9 : vector<8x32xf32>
    %cst_6 = arith.constant dense<0.000000e+00> : vector<8xf32>
    %11 = vector.multi_reduction <add>, %10, %cst_6 [1] : vector<8x32xf32> to vector<8xf32>
    %12 = vector.shape_cast %11 : vector<8xf32> to vector<8x1xf32>
    %13 = math.log %12 : vector<8x1xf32>
    %14 = arith.addf %13, %7 : vector<8x1xf32>
    %15 = tpu.iota {dimensions = array<i32: 1>} : vector<1x32xi32>
    %16 = vector.broadcast %15 : vector<1x32xi32> to vector<8x32xi32>
    %17 = vector.broadcast %4 : vector<8x1xi32> to vector<8x32xi32>
    %18 = arith.cmpi eq, %16, %17 : vector<8x32xi32>
    %19 = vector.broadcast %14 : vector<8x1xf32> to vector<8x32xf32>
    %20 = arith.subf %19, %3 : vector<8x32xf32>
    %21 = vector.broadcast %5 : vector<1x32xf32> to vector<8x32xf32>
    %22 = arith.mulf %21, %20 : vector<8x32xf32>
    %cst_7 = arith.constant 0.000000e+00 : f32
    %23 = vector.broadcast %cst_7 : f32 to vector<8x32xf32>
    %24 = arith.select %18, %22, %23 : vector<8x32xi1>, vector<8x32xf32>
    %c0_8 = arith.constant 0 : index
    %c0_9 = arith.constant 0 : index
    %25 = vector.load %arg6[%c0_8, %c0_9] : memref<8x32xf32, #tpu.memory_space<vmem>>, vector<8x32xf32>
    %26 = vector.shape_cast %24 : vector<8x32xf32> to vector<1x8x32xf32>
    %cst_10 = arith.constant dense<0.000000e+00> : vector<8x32xf32>
    %27 = vector.multi_reduction <add>, %26, %cst_10 [0] : vector<1x8x32xf32> to vector<8x32xf32>
    %28 = arith.addf %25, %27 : vector<8x32xf32>
    %c0_11 = arith.constant 0 : index
    %c0_12 = arith.constant 0 : index
    %29 = vector.load %arg6[%c0_11, %c0_12] : memref<8x32xf32, #tpu.memory_space<vmem>>, vector<8x32xf32>
    tpu.vector_store %arg6[%c0_11, %c0_12], %28 {strides = array<i32>} : memref<8x32xf32, #tpu.memory_space<vmem>>, vector<8x32xf32>,
    %c0_i32_13 = arith.constant 0 : i32
    %30 = arith.cmpi eq, %arg1, %c0_i32_13 : i32
    %31 = arith.extui %30 : i1 to i32
    %c0_i32_14 = arith.constant 0 : i32
    %32 = arith.cmpi ne, %31, %c0_i32_14 : i32
    scf.if %32 {
      %c0_15 = arith.constant 0 : index
      %c0_16 = arith.constant 0 : index
      %33 = vector.load %arg6[%c0_15, %c0_16] : memref<8x32xf32, #tpu.memory_space<vmem>>, vector<8x32xf32>
      %cst_17 = arith.constant dense<0.000000e+00> : vector<32xf32>
      %34 = vector.multi_reduction <add>, %33, %cst_17 [0] : vector<8x32xf32> to vector<32xf32>
      %35 = vector.shape_cast %34 : vector<32xf32> to vector<1x32xf32>
      %cst_18 = arith.constant dense<0.000000e+00> : vector<1xf32>
      %36 = vector.multi_reduction <add>, %35, %cst_18 [1] : vector<1x32xf32> to vector<1xf32>
      %37 = vector.shape_cast %36 : vector<1xf32> to vector<1x1xf32>
      %38 = vector.shape_cast %37 : vector<1x1xf32> to vector<1x1x1xf32>
      %c0_19 = arith.constant 0 : index
      %c0_20 = arith.constant 0 : index
      %c0_21 = arith.constant 0 : index
      %39 = vector.load %arg5[%c0_19, %c0_20, %c0_21] : memref<1x1x1xf32, #tpu.memory_space<vmem>>, vector<1x1x1xf32>
      tpu.vector_store %arg5[%c0_19, %c0_20, %c0_21], %38 {strides = array<i32>} : memref<1x1x1xf32, #tpu.memory_space<vmem>>, vector<1x1x1xf32>,
    } else {
    }
    return
  }
  func.func @transform_0(%arg0: i32, %arg1: i32) -> (i32, i32) {
    %c1_i32 = arith.constant 1 : i32
    %0 = arith.muli %arg0, %c1_i32 : i32
    %1 = arith.addi %0, %arg1 : i32
    %c0_i32 = arith.constant 0 : i32
    %c0_i32_0 = arith.constant 0 : i32
    return %1, %c0_i32 : i32, i32
  }
  func.func @transform_1(%arg0: i32, %arg1: i32) -> (i32, i32) {
    %c1_i32 = arith.constant 1 : i32
    %0 = arith.muli %arg0, %c1_i32 : i32
    %1 = arith.addi %0, %arg1 : i32
    %c0_i32 = arith.constant 0 : i32
    %c0_i32_0 = arith.constant 0 : i32
    return %1, %c0_i32 : i32, i32
  }
  func.func @transform_2(%arg0: i32, %arg1: i32) -> (i32, i32) {
    %c0_i32 = arith.constant 0 : i32
    %c0_i32_0 = arith.constant 0 : i32
    %c0_i32_1 = arith.constant 0 : i32
    return %c0_i32, %c0_i32_0 : i32, i32
  }
  func.func @transform_3(%arg0: i32, %arg1: i32) -> (i32, i32, i32) {
    %c0_i32 = arith.constant 0 : i32
    %c0_i32_0 = arith.constant 0 : i32
    %c0_i32_1 = arith.constant 0 : i32
    return %arg0, %c0_i32, %c0_i32_0 : i32, i32, i32
  }
}

</mosaic_0001>

<llo_original>
// kernel: _masked_weighted_ce_sums.1
$region0: #{_masked_weighted_ce_sums.1}
  #allocation0 [shape = 'u32[]', space=smem, size = 0x4, offset = 0x4, fixed_abs, tag = 'smem constant byte address 0x4 - core index']
  #allocation1 [shape = 'u32[72,128]{1,0:T(1,128)}', space=vmem, size = 0x9000, scoped, tag = 'internal scratch']
  #allocation2 [shape = 'f32[8,32]{1,0:T(8,128)}', space=vmem, size = 0x1000, scoped, tag = 'scratch operand']
  %s0 = inlined_call_operand.vmem [shape: f32[16,32], index: 0, kind: input, shape index: {}]
  %s1 = inlined_call_operand.vmem [shape: s32[16,1], index: 1, kind: input, shape index: {}]
  %s2 = inlined_call_operand.vmem [shape: f32[1,32], index: 2, kind: input, shape index: {}]
  %s3 = inlined_call_operand.vmem [shape: f32[2,1,1], index: 3, kind: output, shape index: {}]
  %s4 = sld [smem:[#allocation0]]
  $region53: #{_masked_weighted_ce_sums.1} parent=0
    _
  %s6 = ssub.s32 1, %s4
  %s7 = scalar_select 0, %s6, %s4
  loop: start=0, step=1, limit=4
  $region2: #{_masked_weighted_ce_sums.1} parent=0 // loop_pre_header
    _
  $region3: #{_masked_weighted_ce_sums.1} parent=0 // loop_header
    %s9 = sphi 0, %s13
    %p10 = scmp.ge.s32.totalorder %s9, 4
    %s16 = sphi 0, %s28
    %s17 = sphi 0, %s24
    %s18 = sphi 0, %s16
    %s19 = sphi 0, %s17
    %s20 = sphi 0, %s18
    %s21 = sphi 0, %s19
    %s33 = sphi 0, %s35
    %s36 = sphi 0, %s33
    %s37 = sphi 0, %s36
    %s53 = sphi 0, %s37
    %s61 = sphi 0, %s63
    %s64 = sphi 0, %s61
    %s65 = sphi 0, %s64
    %s81 = sphi 0, %s65
    %s85 = sphi 0, %s85
    %s87 = sphi 0, %s85
    %s88 = sphi 0, %s87
    %s102 = sphi 0, %s88
    %s108 = sphi 0, %s110
    %s111 = sphi 0, %s108
    %s112 = sphi 0, %s111
    %s128 = sphi 0, %s112
  $region4: #{_masked_weighted_ce_sums.1} parent=0 // loop_header_branch
    %12 = sbr.rel (%p10) target = $region8
  $region5: #{_masked_weighted_ce_sums.1} parent=0 // loop_body
    %s14 = ssub.s32 %s9, 1
    %s15 = ssub.s32 %s9, 2
    %s22 = sadd.s32 1, %s17
    %p23 = scmp.ge.s32.totalorder %s22, 1
    %s24 = scalar_select %p23, 0, %s22
    %s25 = sadd.s32 1, %s16
    %s26 = scalar_select %p23, %s25, %s16
    %p27 = scmp.ge.s32.totalorder %s26, 2
    %s28 = scalar_select %p27, 0, %s26
    %s29 = sadd.s32 %s16, %s17
    %s30 = sadd.s32 %s28, %s24
    %s31 = ssub.s32 %s29, %s30
    %p32 = scmp.eq.s32.totalorder %s31, 0
    %s34 = sadd.s32 %s33, 1
    %s35 = scalar_select %p32, %s33, %s34
    %p38 = pneg %p32
    %p39 = scmp.eq.s32.totalorder %s9, 1
    %p40 = por %p38, %p39
    %p41 = scmp.ne.s32.totalorder %s33, %s36
    %p42 = scmp.eq.s32.totalorder %s9, 0
    %p43 = por %p41, %p42
    %p44 = scmp.ne.s32.totalorder %s33, %s36
    %p45 = scmp.eq.s32.totalorder %s14, 1
    %p46 = por %p44, %p45
    %p47 = scmp.ne.s32.totalorder %s36, %s37
    %p48 = scmp.eq.s32.totalorder %s14, 0
    %p49 = por %p47, %p48
    %p50 = scmp.ne.s32.totalorder %s36, %s37
    %p51 = scmp.eq.s32.totalorder %s15, 1
    %p52 = por %p50, %p51
    %p54 = scmp.ne.s32.totalorder %s37, %s53
    %p55 = scmp.eq.s32.totalorder %s15, 0
    %p56 = por %p54, %p55
    %s57 = sadd.s32 %s16, %s17
    %s58 = sadd.s32 %s28, %s24
    %s59 = ssub.s32 %s57, %s58
    %p60 = scmp.eq.s32.totalorder %s59, 0
    %s62 = sadd.s32 %s61, 1
    %s63 = scalar_select %p60, %s61, %s62
    %p66 = pneg %p60
    %p67 = scmp.eq.s32.totalorder %s9, 1
    %p68 = por %p66, %p67
    %p69 = scmp.ne.s32.totalorder %s61, %s64
    %p70 = scmp.eq.s32.totalorder %s9, 0
    %p71 = por %p69, %p70
    %p72 = scmp.ne.s32.totalorder %s61, %s64
    %p73 = scmp.eq.s32.totalorder %s14, 1
    %p74 = por %p72, %p73
    %p75 = scmp.ne.s32.totalorder %s64, %s65
    %p76 = scmp.eq.s32.totalorder %s14, 0
    %p77 = por %p75, %p76
    %p78 = scmp.ne.s32.totalorder %s64, %s65
    %p79 = scmp.eq.s32.totalorder %s15, 1
    %p80 = por %p78, %p79
    %p82 = scmp.ne.s32.totalorder %s65, %s81
    %p83 = scmp.eq.s32.totalorder %s15, 0
    %p84 = por %p82, %p83
    %s86 = sadd.s32 %s85, 1
    %p89 = scmp.eq.s32.totalorder %s9, 1
    %p90 = scmp.ne.s32.totalorder %s85, %s87
    %p91 = scmp.eq.s32.totalorder %s9, 0
    %p92 = por %p90, %p91
    %p93 = scmp.ne.s32.totalorder %s85, %s87
    %p94 = scmp.eq.s32.totalorder %s14, 1
    %p95 = por %p93, %p94
    %p96 = scmp.ne.s32.totalorder %s87, %s88
    %p97 = scmp.eq.s32.totalorder %s14, 0
    %p98 = por %p96, %p97
    %p99 = scmp.ne.s32.totalorder %s87, %s88
    %p100 = scmp.eq.s32.totalorder %s15, 1
    %p101 = por %p99, %p100
    %p103 = scmp.ne.s32.totalorder %s88, %s102
    %p104 = scmp.eq.s32.totalorder %s15, 0
    %p105 = por %p103, %p104
    %s106 = ssub.s32 %s16, %s28
    %p107 = scmp.eq.s32.totalorder %s106, 0
    %s109 = sadd.s32 %s108, 1
    %s110 = scalar_select %p107, %s108, %s109
    %p113 = pneg %p107
    %p114 = scmp.eq.s32.totalorder %s9, 1
    %p115 = por %p113, %p114
    %p116 = scmp.ne.s32.totalorder %s108, %s111
    %p117 = scmp.eq.s32.totalorder %s9, 0
    %p118 = por %p116, %p117
    %p119 = scmp.ne.s32.totalorder %s108, %s111
    %p120 = scmp.eq.s32.totalorder %s14, 1
    %p121 = por %p119, %p120
    %p122 = scmp.ne.s32.totalorder %s111, %s112
    %p123 = scmp.eq.s32.totalorder %s14, 0
    %p124 = por %p122, %p123
    %p125 = scmp.ne.s32.totalorder %s111, %s112
    %p126 = scmp.eq.s32.totalorder %s15, 1
    %p127 = por %p125, %p126
    %p129 = scmp.ne.s32.totalorder %s112, %s128
    %p130 = scmp.eq.s32.totalorder %s15, 0
    %p131 = por %p129, %p130
    %p132 = scmp.le.s32.totalorder 1, %s9
    %p133 = scmp.lt.s32.totalorder %s9, 3
    %p134 = pnand %p132, %p133
    %p135 = pneg %p134
    // Predicated region
    $region9: #{_masked_weighted_ce_sums.1} parent=5 // pred_check
      _
    $region10: #{_masked_weighted_ce_sums.1} parent=5 // pred_check_branch
      %137 = sbr.rel (%p134) target = $region12
    $region11: #{_masked_weighted_ce_sums.1} parent=5 // pred_region
      %s138 = ssub.s32 %s9, 1
      // Predicated region
      $region13: #{_masked_weighted_ce_sums.1} parent=11 // pred_check
        %p139 = pneg %p98
      $region14: #{_masked_weighted_ce_sums.1} parent=11 // pred_check_branch
        %141 = sbr.rel (%p139) target = $region16
      $region15: #{_masked_weighted_ce_sums.1} parent=11 // pred_region
        _
      $region16: #{_masked_weighted_ce_sums.1} parent=11 // pred_fallthru
        _
    $region12: #{_masked_weighted_ce_sums.1} parent=5 // pred_fallthru
      _
    %p142 = scmp.lt.s32.totalorder %s9, 2
    // Predicated region
    $region17: #{_masked_weighted_ce_sums.1} parent=5 // pred_check
      %p143 = pneg %p142
    $region18: #{_masked_weighted_ce_sums.1} parent=5 // pred_check_branch
      %145 = sbr.rel (%p143) target = $region20
    $region19: #{_masked_weighted_ce_sums.1} parent=5 // pred_region
      // Predicated region
      $region21: #{_masked_weighted_ce_sums.1} parent=19 // pred_check
        %p146 = pneg %p43
      $region22: #{_masked_weighted_ce_sums.1} parent=19 // pred_check_branch
        %148 = sbr.rel (%p146) target = $region24
      $region23: #{_masked_weighted_ce_sums.1} parent=19 // pred_region
        %s149 = sadd.s32 %s16, %s17
        %p150 = scmp.lt.s32.totalorder %s149, 1
        %s151 = scalar_select %p150, %s149, 1
        %s152 = smul.addr %s151, 8
        %s153 = scalar_lea.vmem %s0, %s152
        %s154 = sadd.s32 %s16, %s17
      $region24: #{_masked_weighted_ce_sums.1} parent=19 // pred_fallthru
        _
      // Predicated region
      $region25: #{_masked_weighted_ce_sums.1} parent=19 // pred_check
        %p155 = pneg %p71
      $region26: #{_masked_weighted_ce_sums.1} parent=19 // pred_check_branch
        %157 = sbr.rel (%p155) target = $region28
      $region27: #{_masked_weighted_ce_sums.1} parent=19 // pred_region
        %s158 = sadd.s32 %s16, %s17
        %p159 = scmp.lt.s32.totalorder %s158, 1
        %s160 = scalar_select %p159, %s158, 1
        %s161 = smul.addr %s160, 8
        %s162 = scalar_lea.vmem %s1, %s161
        %s163 = sadd.s32 %s16, %s17
      $region28: #{_masked_weighted_ce_sums.1} parent=19 // pred_fallthru
        _
    $region20: #{_masked_weighted_ce_sums.1} parent=5 // pred_fallthru
      _
    %p164 = scmp.le.s32.totalorder 1, %s9
    %p165 = scmp.lt.s32.totalorder %s9, 3
    %p166 = pnand %p164, %p165
    %p167 = pneg %p166
    // Predicated region
    $region29: #{_masked_weighted_ce_sums.1} parent=5 // pred_check
      _
    $region30: #{_masked_weighted_ce_sums.1} parent=5 // pred_check_branch
      %169 = sbr.rel (%p166) target = $region32
    $region31: #{_masked_weighted_ce_sums.1} parent=5 // pred_region
      %s170 = ssub.s32 %s9, 1
      %s171 = sadd.s32 %s18, %s19
      %p172 = scmp.lt.s32.totalorder %s171, 1
      %s173 = scalar_select %p172, %s171, 1
      %s174 = smul.addr %s173, 8
      %s175 = scalar_lea.vmem %s0, %s174
      %p176 = pneg %p49
      %p177 = pneg %p46
      %s178 = sadd.s32 %s18, %s19
      %p179 = scmp.lt.s32.totalorder %s178, 1
      %s180 = scalar_select %p179, %s178, 1
      %s181 = smul.addr %s180, 8
      %s182 = scalar_lea.vmem %s1, %s181
      %p183 = pneg %p77
      %p184 = pneg %p74
      %p185 = pneg %p98
      %p186 = pneg %p95
      %p187 = pneg %p124
      %p188 = pneg %p121
      %p189 = scmp.lt.s32.totalorder %s18, 1
      %s190 = scalar_select %p189, %s18, 1
      %s191 = scalar_lea.vmem %s3, %s190
      %s192 = sadd.s32 %s18, %s19
      %p193 = scmp.lt.s32.totalorder %s192, 1
      %s194 = scalar_select %p193, %s192, 1
      %s195 = smul.addr %s194, 8
      %s196 = scalar_lea.vmem %s0, %s195
      %s197 = sadd.s32 %s18, %s19
      %s198 = sadd.s32 %s18, %s19
      %p199 = scmp.lt.s32.totalorder %s198, 1
      %s200 = scalar_select %p199, %s198, 1
      %s201 = smul.addr %s200, 8
      %s202 = scalar_lea.vmem %s1, %s201
      %s203 = sadd.s32 %s18, %s19
      %p204 = scmp.lt.s32.totalorder %s18, 1
      %s205 = scalar_select %p204, %s18, 1
      %s206 = scalar_lea.vmem %s3, %s205
      %p207 = scmp.eq.s32.totalorder %s19, 0
      // Predicated region
      $region33: #{_masked_weighted_ce_sums.1} parent=31 // pred_check
        %p208 = pneg %p207
      $region34: #{_masked_weighted_ce_sums.1} parent=31 // pred_check_branch
        %210 = sbr.rel (%p208) target = $region36
      $region35: #{_masked_weighted_ce_sums.1} parent=31 // pred_region
        %vm211 = vcmask 261120
        %212 = vst.msk [vmem:[#allocation2] sm:$0xff] %vm211, 0.0
      $region36: #{_masked_weighted_ce_sums.1} parent=31 // pred_fallthru
        _
      %v213 = vld [vmem:[%s196] sm:$0xff]
      %v214 = vld [vmem:[%s202] sm:$0xff]
      %v215 = vld [vmem:[%s2] sm:$0x1]
      %vm216 = vcmask 261120
      %v217 = vsel %vm216, %v213, -inf
      %218 = vmax.xlane.f32.xlu0 %v217
      %v219 = vpop.xlane.xlu0 %218
      %v220 = vsub.f32 %v213, %v219
      %v221 = vmul.f32 %v220, 1.442695
      %v222 = vpow.pop %v221
      %v223 = vsel %vm216, %v222, 0.0
      %224 = vadd.xlane.f32.xlu0 %v223
      %v225 = vpop.xlane.xlu0 %224
      %v226 = vlog2.pop %v225
      %v227 = vmul.f32 %v226, 0.6931472
      %v228 = vadd.f32 %v227, %v219
      %v229 = vlaneseq
      %v230 = vand.u32 %v229, 127
      %231 = vset.pattern.permute.xlu0 0
      %232 = vperm.xlu0 %231, %v214
      %v233 = vpop.permute.xlu0 %232
      %vm234 = vcmp.eq.s32.totalorder %v230, %v233
      %v235 = vsub.f32 %v228, %v213
      %v237 = vperm.slane %v215, 0
      %v239 = vmul.f32 %v237, %v235
      %v240 = vsel %vm234, %v239, 0.0
      %v241 = vld [vmem:[#allocation2] sm:$0xff]
      %v242 = vadd.f32 %v240, 0.0
      %v243 = vadd.f32 %v241, %v242
      %244 = vst.msk [vmem:[#allocation2] sm:$0xff] %vm216, %v243
      // Predicated region
      $region37: #{_masked_weighted_ce_sums.1} parent=31 // pred_check
        %p245 = pneg %p207
      $region38: #{_masked_weighted_ce_sums.1} parent=31 // pred_check_branch
        %247 = sbr.rel (%p245) target = $region40
      $region39: #{_masked_weighted_ce_sums.1} parent=31 // pred_region
        %v248 = vld [vmem:[#allocation2] sm:$0xff]
        %v249 = vsel %vm216, %v248, 0.0
        %v250 = vrot.slane %v249, 4
        %v251 = vadd.f32 %v249, %v250
        %v252 = vrot.slane %v251, 2
        %v253 = vadd.f32 %v251, %v252
        %v254 = vrot.slane %v253, 1
        %v255 = vadd.f32 %v253, %v254
        %v256 = vsel %vm216, %v255, 0.0
        %257 = vadd.xlane.f32.xlu0 %v256
        %v258 = vpop.xlane.xlu0 %257
        %vm259 = vcmask 0
        %260 = vst.msk [vmem:[%s206] sm:$0x1] %vm259, %v258
      $region40: #{_masked_weighted_ce_sums.1} parent=31 // pred_fallthru
        _
      %p261 = scmp.lt.s32.totalorder %s18, 1
      %s262 = scalar_select %p261, %s18, 1
      %s263 = scalar_lea.vmem %s3, %s262
      // Predicated region
      $region41: #{_masked_weighted_ce_sums.1} parent=31 // pred_check
        %p264 = pneg %p121
      $region42: #{_masked_weighted_ce_sums.1} parent=31 // pred_check_branch
        %266 = sbr.rel (%p264) target = $region44
      $region43: #{_masked_weighted_ce_sums.1} parent=31 // pred_region
        _
      $region44: #{_masked_weighted_ce_sums.1} parent=31 // pred_fallthru
        _
    $region32: #{_masked_weighted_ce_sums.1} parent=5 // pred_fallthru
      _
    %p267 = scmp.le.s32.totalorder 2, %s9
    // Predicated region
    $region45: #{_masked_weighted_ce_sums.1} parent=5 // pred_check
      %p268 = pneg %p267
    $region46: #{_masked_weighted_ce_sums.1} parent=5 // pred_check_branch
      %270 = sbr.rel (%p268) target = $region48
    $region47: #{_masked_weighted_ce_sums.1} parent=5 // pred_region
      %s271 = ssub.s32 %s9, 2
      // Predicated region
      $region49: #{_masked_weighted_ce_sums.1} parent=47 // pred_check
        %p272 = pneg %p127
      $region50: #{_masked_weighted_ce_sums.1} parent=47 // pred_check_branch
        %274 = sbr.rel (%p272) target = $region52
      $region51: #{_masked_weighted_ce_sums.1} parent=47 // pred_region
        %p275 = scmp.lt.s32.totalorder %s20, 1
        %s276 = scalar_select %p275, %s20, 1
        %s277 = scalar_lea.vmem %s3, %s276
      $region52: #{_masked_weighted_ce_sums.1} parent=47 // pred_fallthru
        _
    $region48: #{_masked_weighted_ce_sums.1} parent=5 // pred_fallthru
      _
  $region6: #{_masked_weighted_ce_sums.1} parent=0 // loop_footer
    %s13 = sadd.s32 1, %s9
  $region7: #{_masked_weighted_ce_sums.1} parent=0 // loop_footer_branch
    %8 = sbr.rel target = $region3
  $region8: #{_masked_weighted_ce_sums.1} parent=0 // loop_exit
    _

</llo_original>
